<compile_context>
chip_gen: v7x
topology: tpu7x:2x2x1
jax: 0.10.0
libtpu: 0.0.40
codegen_flags: <defaults>
</compile_context>

<pallas_src>
import functools

import jax
import jax.numpy as jnp
from jax import lax
from jax.experimental import pallas as pl
from jax.experimental.pallas import tpu as pltpu

# --- small, self-consistent toy hyperparameters (module config: n_embed=512, heads=8) ---
B = 2          # batch
T = 8          # sequence length (<= max_seq_len)
E = 32         # n_embed
NUM_HEADS = 4  # num_heads
H = 8          # H_size (per-head dim)


def pack_mha_params(wq, wk, wv, wp, bias, *, compute_dtype=jnp.bfloat16):
    """One-time parameter packing (at init, NOT on the per-call critical path).

    wq/wk/wv : (NH, H, E)  torch nn.Linear weights (out_features, in_features) per head
    wp       : (E, NH*H)   torch proj weight (out_features, in_features)
    bias     : (E,)        torch proj bias
    Returns:
      wqkv_cm : (3*NH*H, E) channel-major [Q rows | K rows | V rows]; Q rows pre-scaled
                by 1/sqrt(H) so no per-score scaling is needed in the kernel; bf16.
      wp_cm   : (NH*H, E)   projection in x@W layout; bf16.
      bias2d  : (1, E)      f32 bias row.
    """
    nh, hd, e = wq.shape
    scale = jnp.float32(hd) ** jnp.float32(-0.5)
    wqkv_cm = jnp.concatenate(
        [(wq * scale).reshape(nh * hd, e),   # fold score scale into Q channels (free)
         wk.reshape(nh * hd, e),
         wv.reshape(nh * hd, e)],
        axis=0).astype(compute_dtype)
    wp_cm = jnp.transpose(wp).astype(compute_dtype)           # (NH*H, E)
    bias2d = bias.reshape(1, e).astype(jnp.float32)
    return wqkv_cm, wp_cm, bias2d


def _mha_kernel(x_ref, wqkv_ref, wp_ref, bias_ref, o_ref, *, nh, hd):
    """One grid step = one batch element.

    x_ref    : (T, E)        f32 input rows for this batch
    wqkv_ref : (3*nh*hd, E)  bf16 packed Q/K/V weights, channel-major
    wp_ref   : (nh*hd, E)    bf16 output projection (x @ W layout)
    bias_ref : (1, E)        f32 projection bias
    o_ref    : (T, E)        f32 output rows for this batch
    """
    tz = x_ref.shape[0]
    d = nh * hd

    x_bf = x_ref[...].astype(jnp.bfloat16)                                   # (T, E)

    # All heads' Q/K/V in ONE MXU matmul, result channel-major: (3*nh*hd, T).
    # qkv_t[c, t] = sum_e wqkv[c, e] * x[t, e]
    qkv_t = lax.dot_general(wqkv_ref[...], x_bf, (((1,), (1,)), ((), ())),
                            preferred_element_type=jnp.float32)

    # Head-major views: pure major-axis slices + reshapes (no lane selects/relayouts).
    q = qkv_t[0:d].reshape(nh, hd, tz).astype(jnp.bfloat16)                  # (nh, hd, T)
    k = qkv_t[d:2 * d].reshape(nh, hd, tz).astype(jnp.bfloat16)              # (nh, hd, T)
    v = qkv_t[2 * d:3 * d].reshape(nh, hd, tz).astype(jnp.bfloat16)          # (nh, hd, T)

    # Scores for all heads at once (scale already folded into Q weights):
    # s[h, i, j] = sum_c q[h, c, i] * k[h, c, j]    (einsum 'hci,hcj->hij')
    s = lax.dot_general(q, k, (((1,), (1,)), ((0,), (0,))),
                        preferred_element_type=jnp.float32)                  # (nh, T, T)

    # Causal additive mask, built once (shape-static).
    row = lax.broadcasted_iota(jnp.int32, (tz, tz), 0)
    col = lax.broadcasted_iota(jnp.int32, (tz, tz), 1)
    add_mask = jnp.where(col <= row, jnp.float32(0.0), jnp.float32(-1e30))   # (T, T)
    s = s + add_mask[None, :, :]

    # Softmax in f32.  NOTE: exact divide — pl.reciprocal(approx=True) is bf16-precision
    # outside Mosaic and caused the previous numerical mismatch.
    m = jnp.max(s, axis=-1, keepdims=True)
    e = jnp.exp(s - m)
    p = (e / jnp.sum(e, axis=-1, keepdims=True)).astype(jnp.bfloat16)        # (nh, T, T)

    # Context, channel-major: ctx_t[h, c, t] = sum_j v[h, c, j] * p[h, t, j]
    # (einsum 'hcj,htj->hct')
    ctx_t = lax.dot_general(v, p, (((2,), (2,)), ((0,), (0,))),
                            preferred_element_type=jnp.float32)              # (nh, hd, T)

    # Head concat is a free major-axis merge; projection is ONE matmul over nh*hd.
    ctx_cm = ctx_t.reshape(d, tz).astype(jnp.bfloat16)                       # (nh*hd, T)
    out = lax.dot_general(ctx_cm, wp_ref[...], (((0,), (0,)), ((), ())),
                          preferred_element_type=jnp.float32)                # (T, E)

    # NOTE: E=32 here means a masked (32-lane) store; at the real config E=512 the
    # store is already lane-dense, so nothing further is needed there.
    o_ref[...] = out + bias_ref[...]


def masked_multi_head_attention(x, wqkv_cm, wp_cm, bias2d, *, num_heads, head_dim):
    """x: (B, T, E) f32; packed params from pack_mha_params.  Returns (B, T, E) f32."""
    bz, tz, ez = x.shape
    d3 = 3 * num_heads * head_dim

    x2d = x.reshape(bz * tz, ez)   # contiguous reshape, free

    kernel = functools.partial(_mha_kernel, nh=num_heads, hd=head_dim)

    out2d = pl.pallas_call(
        kernel,
        out_shape=jax.ShapeDtypeStruct((bz * tz, ez), jnp.float32),
        grid_spec=pltpu.PrefetchScalarGridSpec(
            num_scalar_prefetch=0,
            grid=(bz,),                                     # parallel over batch (v7x: 2 TCs)
            in_specs=[
                pl.BlockSpec((tz, ez), lambda b: (b, 0)),                     # x rows
                pl.BlockSpec((d3, ez), lambda b: (0, 0)),                     # packed Wqkv
                pl.BlockSpec((num_heads * head_dim, ez), lambda b: (0, 0)),   # Wp
                pl.BlockSpec((1, ez), lambda b: (0, 0)),                      # bias
            ],
            out_specs=pl.BlockSpec((tz, ez), lambda b: (b, 0)),
        ),
        compiler_params=pltpu.CompilerParams(
            dimension_semantics=("parallel",),
            vmem_limit_bytes=32 * 1024 * 1024,   # explicit; fits all generations incl. v7x
        ),
    )(x2d, wqkv_cm, wp_cm, bias2d)

    return out2d.reshape(bz, tz, ez)


def _reference(x, wq, wk, wv, wp, bias):
    """Pure-JAX f32 reference mirroring the PyTorch forward (eval mode)."""
    tz = x.shape[1]
    mask = jnp.tril(jnp.ones((tz, tz), dtype=bool))[None]
    outs = []
    for h in range(wq.shape[0]):
        q = x @ wq[h].T
        k = x @ wk[h].T
        v = x @ wv[h].T
        s = q @ jnp.swapaxes(k, -1, -2) * (k.shape[-1] ** -0.5)
        s = jnp.where(mask, s, -jnp.inf)
        outs.append(jax.nn.softmax(s, axis=-1) @ v)
    cat = jnp.concatenate(outs, axis=-1)        # (B, T, NH*H)
    return cat @ wp.T + bias


if __name__ == "__main__":
    key = jax.random.PRNGKey(0)
    kx, kq, kk, kv, kp, kb = jax.random.split(key, 6)

    x = jax.random.normal(kx, (B, T, E), dtype=jnp.float32)

    # torch nn.Linear layouts: per-head (H, E) weights, proj (E, NH*H) weight + (E,) bias.
    wq = jax.random.normal(kq, (NUM_HEADS, H, E), dtype=jnp.float32) * 0.1
    wk = jax.random.normal(kk, (NUM_HEADS, H, E), dtype=jnp.float32) * 0.1
    wv = jax.random.normal(kv, (NUM_HEADS, H, E), dtype=jnp.float32) * 0.1
    wp = jax.random.normal(kp, (E, NUM_HEADS * H), dtype=jnp.float32) * 0.1
    bias = jax.random.normal(kb, (E,), dtype=jnp.float32) * 0.1

    # One-time parameter packing (init-time, outside the forward call).
    wqkv_cm, wp_cm, bias2d = pack_mha_params(wq, wk, wv, wp, bias)

    out = masked_multi_head_attention(x, wqkv_cm, wp_cm, bias2d,
                                      num_heads=NUM_HEADS, head_dim=H)
    out = jax.block_until_ready(out)

    ref = _reference(x, wq, wk, wv, wp, bias)
    assert out.shape == (B, T, E)
    # Tolerance sized for bf16 MXU operands (f32 accumulation): ~1e-2-level absolute
    # deviations across the 4 chained matmuls; softmax itself is exact f32.
    max_err = float(jnp.max(jnp.abs(out - ref)))
    assert jnp.allclose(out, ref, atol=3e-2, rtol=3e-2), (
        f"mismatch vs reference (max abs err = {max_err:.3e})")

    print("KERNEL_OK")
</pallas_src>

<mosaic_0001>
module attributes {stable_mosaic.version = 11 : i64} {
  func.func @_mha_kernel(%arg0: i32, %arg1: memref<8x32xf32, #tpu.memory_space<vmem>>, %arg2: memref<96x32xbf16, #tpu.memory_space<vmem>>, %arg3: memref<32x32xbf16, #tpu.memory_space<vmem>>, %arg4: memref<1x32xf32, #tpu.memory_space<vmem>>, %arg5: memref<8x32xf32, #tpu.memory_space<vmem>>) attributes {dimension_semantics = [#tpu.dimension_semantics<parallel>], iteration_bounds = array<i64: 2>, scalar_prefetch = 0 : i64, scratch_operands = 0 : i64, tpu.core_type = #tpu.core_type<tc>, window_params = [{transform_indices = @transform_0, window_bounds = array<i64: 8, 32>}, {pipeline_mode = #tpu.pipeline_mode<synchronous>, transform_indices = @transform_1, window_bounds = array<i64: 96, 32>}, {pipeline_mode = #tpu.pipeline_mode<synchronous>, transform_indices = @transform_2, window_bounds = array<i64: 32, 32>}, {pipeline_mode = #tpu.pipeline_mode<synchronous>, transform_indices = @transform_3, window_bounds = array<i64: 1, 32>}, {transform_indices = @transform_4, window_bounds = array<i64: 8, 32>}]} {
    %c0 = arith.constant 0 : index
    %c0_0 = arith.constant 0 : index
    %0 = vector.load %arg1[%c0, %c0_0] : memref<8x32xf32, #tpu.memory_space<vmem>>, vector<8x32xf32>
    %1 = arith.truncf %0 : vector<8x32xf32> to vector<8x32xbf16>
    %c0_1 = arith.constant 0 : index
    %c0_2 = arith.constant 0 : index
    %2 = vector.load %arg2[%c0_1, %c0_2] : memref<96x32xbf16, #tpu.memory_space<vmem>>, vector<96x32xbf16>
    %cst = arith.constant dense<0.000000e+00> : vector<96x8xf32>
    %3 = tpu.matmul %2, %1, %cst {dimension_numbers = #tpu.dot_dimension_numbers<[1], [1], [0], [0], [0, 0, 1, 0], [], []>} : vector<96x32xbf16>, vector<8x32xbf16>, vector<96x8xf32> -> vector<96x8xf32>
    %4 = vector.extract_strided_slice %3 {offsets = [0, 0], sizes = [32, 8], strides = [1, 1]} : vector<96x8xf32> to vector<32x8xf32>
    %5 = vector.shape_cast %4 : vector<32x8xf32> to vector<4x8x8xf32>
    %6 = arith.truncf %5 : vector<4x8x8xf32> to vector<4x8x8xbf16>
    %7 = vector.extract_strided_slice %3 {offsets = [32, 0], sizes = [32, 8], strides = [1, 1]} : vector<96x8xf32> to vector<32x8xf32>
    %8 = vector.shape_cast %7 : vector<32x8xf32> to vector<4x8x8xf32>
    %9 = arith.truncf %8 : vector<4x8x8xf32> to vector<4x8x8xbf16>
    %10 = vector.extract_strided_slice %3 {offsets = [64, 0], sizes = [32, 8], strides = [1, 1]} : vector<96x8xf32> to vector<32x8xf32>
    %11 = vector.shape_cast %10 : vector<32x8xf32> to vector<4x8x8xf32>
    %12 = arith.truncf %11 : vector<4x8x8xf32> to vector<4x8x8xbf16>
    %cst_3 = arith.constant dense<0.000000e+00> : vector<4x8x8xf32>
    %13 = tpu.matmul %6, %9, %cst_3 {dimension_numbers = #tpu.dot_dimension_numbers<[1], [1], [2], [2], [0, 0, 0, 2, 1, 2], [0], [0]>} : vector<4x8x8xbf16>, vector<4x8x8xbf16>, vector<4x8x8xf32> -> vector<4x8x8xf32>
    %14 = tpu.iota {dimensions = array<i32: 0>} : vector<8x8xi32>
    %15 = tpu.iota {dimensions = array<i32: 1>} : vector<8x8xi32>
    %16 = arith.cmpi sle, %15, %14 : vector<8x8xi32>
    %cst_4 = arith.constant 0.000000e+00 : f32
    %cst_5 = arith.constant -1.000000e+30 : f32
    %17 = vector.broadcast %cst_4 : f32 to vector<8x8xf32>
    %18 = vector.broadcast %cst_5 : f32 to vector<8x8xf32>
    %19 = arith.select %16, %17, %18 : vector<8x8xi1>, vector<8x8xf32>
    %20 = vector.shape_cast %19 : vector<8x8xf32> to vector<1x8x8xf32>
    %21 = vector.broadcast %20 : vector<1x8x8xf32> to vector<4x8x8xf32>
    %22 = arith.addf %13, %21 : vector<4x8x8xf32>
    %cst_6 = arith.constant dense<0xFF800000> : vector<4x8xf32>
    %23 = vector.multi_reduction <maximumf>, %22, %cst_6 [2] : vector<4x8x8xf32> to vector<4x8xf32>
    %24 = vector.shape_cast %23 : vector<4x8xf32> to vector<4x8x1xf32>
    %25 = vector.broadcast %24 : vector<4x8x1xf32> to vector<4x8x8xf32>
    %26 = arith.subf %22, %25 : vector<4x8x8xf32>
    %27 = math.exp %26 : vector<4x8x8xf32>
    %cst_7 = arith.constant dense<0.000000e+00> : vector<4x8xf32>
    %28 = vector.multi_reduction <add>, %27, %cst_7 [2] : vector<4x8x8xf32> to vector<4x8xf32>
    %29 = vector.shape_cast %28 : vector<4x8xf32> to vector<4x8x1xf32>
    %30 = vector.broadcast %29 : vector<4x8x1xf32> to vector<4x8x8xf32>
    %31 = arith.divf %27, %30 : vector<4x8x8xf32>
    %32 = arith.truncf %31 : vector<4x8x8xf32> to vector<4x8x8xbf16>
    %cst_8 = arith.constant dense<0.000000e+00> : vector<4x8x8xf32>
    %33 = tpu.matmul %12, %32, %cst_8 {dimension_numbers = #tpu.dot_dimension_numbers<[2], [2], [1], [1], [0, 0, 0, 1, 1, 1], [0], [0]>} : vector<4x8x8xbf16>, vector<4x8x8xbf16>, vector<4x8x8xf32> -> vector<4x8x8xf32>
    %34 = vector.shape_cast %33 : vector<4x8x8xf32> to vector<32x8xf32>
    %35 = arith.truncf %34 : vector<32x8xf32> to vector<32x8xbf16>
    %c0_9 = arith.constant 0 : index
    %c0_10 = arith.constant 0 : index
    %36 = vector.load %arg3[%c0_9, %c0_10] : memref<32x32xbf16, #tpu.memory_space<vmem>>, vector<32x32xbf16>
    %cst_11 = arith.constant dense<0.000000e+00> : vector<8x32xf32>
    %37 = tpu.matmul %35, %36, %cst_11 {dimension_numbers = #tpu.dot_dimension_numbers<[0], [0], [1], [1], [0, 1, 1, 1], [], []>} : vector<32x8xbf16>, vector<32x32xbf16>, vector<8x32xf32> -> vector<8x32xf32>
    %c0_12 = arith.constant 0 : index
    %c0_13 = arith.constant 0 : index
    %38 = vector.load %arg4[%c0_12, %c0_13] : memref<1x32xf32, #tpu.memory_space<vmem>>, vector<1x32xf32>
    %39 = vector.broadcast %38 : vector<1x32xf32> to vector<8x32xf32>
    %40 = arith.addf %37, %39 : vector<8x32xf32>
    %c0_14 = arith.constant 0 : index
    %c0_15 = arith.constant 0 : index
    %41 = vector.load %arg5[%c0_14, %c0_15] : memref<8x32xf32, #tpu.memory_space<vmem>>, vector<8x32xf32>
    tpu.vector_store %arg5[%c0_14, %c0_15], %40 {strides = array<i32>} : memref<8x32xf32, #tpu.memory_space<vmem>>, vector<8x32xf32>,
    return
  }
  func.func @transform_0(%arg0: i32) -> (i32, i32) {
    %c0_i32 = arith.constant 0 : i32
    %c0_i32_0 = arith.constant 0 : i32
    return %arg0, %c0_i32 : i32, i32
  }
  func.func @transform_1(%arg0: i32) -> (i32, i32) {
    %c0_i32 = arith.constant 0 : i32
    %c0_i32_0 = arith.constant 0 : i32
    %c0_i32_1 = arith.constant 0 : i32
    return %c0_i32, %c0_i32_0 : i32, i32
  }
  func.func @transform_2(%arg0: i32) -> (i32, i32) {
    %c0_i32 = arith.constant 0 : i32
    %c0_i32_0 = arith.constant 0 : i32
    %c0_i32_1 = arith.constant 0 : i32
    return %c0_i32, %c0_i32_0 : i32, i32
  }
  func.func @transform_3(%arg0: i32) -> (i32, i32) {
    %c0_i32 = arith.constant 0 : i32
    %c0_i32_0 = arith.constant 0 : i32
    %c0_i32_1 = arith.constant 0 : i32
    return %c0_i32, %c0_i32_0 : i32, i32
  }
  func.func @transform_4(%arg0: i32) -> (i32, i32) {
    %c0_i32 = arith.constant 0 : i32
    %c0_i32_0 = arith.constant 0 : i32
    return %arg0, %c0_i32 : i32, i32
  }
}

</mosaic_0001>

<llo_original>
// kernel: tpu_custom_call.1
$region0: #{tpu_custom_call.1}
  #allocation0 [shape = 'u32[]', space=smem, size = 0x4, offset = 0x4, fixed_abs, tag = 'smem constant byte address 0x4 - core index']
  #allocation1 [shape = 'u32[144,128]{1,0:T(1,128)}', space=vmem, size = 0x12000, scoped, tag = 'internal scratch']
  %s0 = inlined_call_operand.vmem [shape: f32[16,32], index: 0, kind: input, shape index: {}]
  %s1 = inlined_call_operand.vmem [shape: bf16[96,32], index: 1, kind: input, shape index: {}]
  %s2 = inlined_call_operand.vmem [shape: bf16[32,32], index: 2, kind: input, shape index: {}]
  %s3 = inlined_call_operand.vmem [shape: f32[1,32], index: 3, kind: input, shape index: {}]
  %s4 = inlined_call_operand.hbm [shape: f32[16,32], index: 4, kind: output, shape index: {}]
  %s5 = sld [smem:[#allocation0]]
  $region49: #{tpu_custom_call.1} parent=0
    _
  %s7 = ssub.s32 1, %s5
  %s8 = scalar_select 0, %s7, %s5
  $region1: #{tpu_custom_call.1} parent=0
    #allocation2 [shape = 'u8[8192]{0}', space=vmem, size = 0x2000, scoped, tag = 'output window, operand 0']
    #allocation3 [shape = 's32[2]{0}', space=sflag, size = 0x8, scoped, tag = 'scoped memory for tpu_custom_call.1']
    %9 = vsyncpa [#allocation3], 0
    %s10 = scalar_lea.sflag [#allocation3], 1
    %11 = vsyncpa %s10, 0
    loop: start=0, step=1, limit=4
    $region2: #{tpu_custom_call.1} parent=1 // loop_pre_header
      _
    $region3: #{tpu_custom_call.1} parent=1 // loop_header
      %s13 = sphi 0, %s17
      %p14 = scmp.ge.s32.totalorder %s13, 4
      %s23 = sphi 0, %s25
      %s26 = sphi 0, %s23
      %s27 = sphi 0, %s26
      %s43 = sphi 0, %s27
      %s47 = sphi 0, %s47
      %s49 = sphi 0, %s47
      %s50 = sphi 0, %s49
      %s64 = sphi 0, %s50
      %s68 = sphi 0, %s68
      %s70 = sphi 0, %s68
      %s71 = sphi 0, %s70
      %s85 = sphi 0, %s71
      %s89 = sphi 0, %s89
      %s91 = sphi 0, %s89
      %s92 = sphi 0, %s91
      %s106 = sphi 0, %s92
      %s112 = sphi 0, %s114
      %s115 = sphi 0, %s112
      %s116 = sphi 0, %s115
      %s132 = sphi 0, %s116
    $region4: #{tpu_custom_call.1} parent=1 // loop_header_branch
      %16 = sbr.rel (%p14) target = $region8
    $region5: #{tpu_custom_call.1} parent=1 // loop_body
      %s18 = ssub.s32 %s13, 1
      %s19 = ssub.s32 %s13, 2
      %s20 = sadd.s32 %s13, 1
      %s21 = ssub.s32 %s13, %s20
      %p22 = scmp.eq.s32.totalorder %s21, 0
      %s24 = sadd.s32 %s23, 1
      %s25 = scalar_select %p22, %s23, %s24
      %p28 = pneg %p22
      %p29 = scmp.eq.s32.totalorder %s13, 1
      %p30 = por %p28, %p29
      %p31 = scmp.ne.s32.totalorder %s23, %s26
      %p32 = scmp.eq.s32.totalorder %s13, 0
      %p33 = por %p31, %p32
      %p34 = scmp.ne.s32.totalorder %s23, %s26
      %p35 = scmp.eq.s32.totalorder %s18, 1
      %p36 = por %p34, %p35
      %p37 = scmp.ne.s32.totalorder %s26, %s27
      %p38 = scmp.eq.s32.totalorder %s18, 0
      %p39 = por %p37, %p38
      %p40 = scmp.ne.s32.totalorder %s26, %s27
      %p41 = scmp.eq.s32.totalorder %s19, 1
      %p42 = por %p40, %p41
      %p44 = scmp.ne.s32.totalorder %s27, %s43
      %p45 = scmp.eq.s32.totalorder %s19, 0
      %p46 = por %p44, %p45
      %s48 = sadd.s32 %s47, 1
      %p51 = scmp.eq.s32.totalorder %s13, 1
      %p52 = scmp.ne.s32.totalorder %s47, %s49
      %p53 = scmp.eq.s32.totalorder %s13, 0
      %p54 = por %p52, %p53
      %p55 = scmp.ne.s32.totalorder %s47, %s49
      %p56 = scmp.eq.s32.totalorder %s18, 1
      %p57 = por %p55, %p56
      %p58 = scmp.ne.s32.totalorder %s49, %s50
      %p59 = scmp.eq.s32.totalorder %s18, 0
      %p60 = por %p58, %p59
      %p61 = scmp.ne.s32.totalorder %s49, %s50
      %p62 = scmp.eq.s32.totalorder %s19, 1
      %p63 = por %p61, %p62
      %p65 = scmp.ne.s32.totalorder %s50, %s64
      %p66 = scmp.eq.s32.totalorder %s19, 0
      %p67 = por %p65, %p66
      %s69 = sadd.s32 %s68, 1
      %p72 = scmp.eq.s32.totalorder %s13, 1
      %p73 = scmp.ne.s32.totalorder %s68, %s70
      %p74 = scmp.eq.s32.totalorder %s13, 0
      %p75 = por %p73, %p74
      %p76 = scmp.ne.s32.totalorder %s68, %s70
      %p77 = scmp.eq.s32.totalorder %s18, 1
      %p78 = por %p76, %p77
      %p79 = scmp.ne.s32.totalorder %s70, %s71
      %p80 = scmp.eq.s32.totalorder %s18, 0
      %p81 = por %p79, %p80
      %p82 = scmp.ne.s32.totalorder %s70, %s71
      %p83 = scmp.eq.s32.totalorder %s19, 1
      %p84 = por %p82, %p83
      %p86 = scmp.ne.s32.totalorder %s71, %s85
      %p87 = scmp.eq.s32.totalorder %s19, 0
      %p88 = por %p86, %p87
      %s90 = sadd.s32 %s89, 1
      %p93 = scmp.eq.s32.totalorder %s13, 1
      %p94 = scmp.ne.s32.totalorder %s89, %s91
      %p95 = scmp.eq.s32.totalorder %s13, 0
      %p96 = por %p94, %p95
      %p97 = scmp.ne.s32.totalorder %s89, %s91
      %p98 = scmp.eq.s32.totalorder %s18, 1
      %p99 = por %p97, %p98
      %p100 = scmp.ne.s32.totalorder %s91, %s92
      %p101 = scmp.eq.s32.totalorder %s18, 0
      %p102 = por %p100, %p101
      %p103 = scmp.ne.s32.totalorder %s91, %s92
      %p104 = scmp.eq.s32.totalorder %s19, 1
      %p105 = por %p103, %p104
      %p107 = scmp.ne.s32.totalorder %s92, %s106
      %p108 = scmp.eq.s32.totalorder %s19, 0
      %p109 = por %p107, %p108
      %s110 = ssub.s32 %s13, %s20
      %p111 = scmp.eq.s32.totalorder %s110, 0
      %s113 = sadd.s32 %s112, 1
      %s114 = scalar_select %p111, %s112, %s113
      %p117 = pneg %p111
      %p118 = scmp.eq.s32.totalorder %s13, 1
      %p119 = por %p117, %p118
      %p120 = scmp.ne.s32.totalorder %s112, %s115
      %p121 = scmp.eq.s32.totalorder %s13, 0
      %p122 = por %p120, %p121
      %p123 = scmp.ne.s32.totalorder %s112, %s115
      %p124 = scmp.eq.s32.totalorder %s18, 1
      %p125 = por %p123, %p124
      %p126 = scmp.ne.s32.totalorder %s115, %s116
      %p127 = scmp.eq.s32.totalorder %s18, 0
      %p128 = por %p126, %p127
      %p129 = scmp.ne.s32.totalorder %s115, %s116
      %p130 = scmp.eq.s32.totalorder %s19, 1
      %p131 = por %p129, %p130
      %p133 = scmp.ne.s32.totalorder %s116, %s132
      %p134 = scmp.eq.s32.totalorder %s19, 0
      %p135 = por %p133, %p134
      %p136 = scmp.le.s32.totalorder 1, %s13
      %p137 = scmp.lt.s32.totalorder %s13, 3
      %p138 = pnand %p136, %p137
      %p139 = pneg %p138
      // Predicated region
      $region9: #{tpu_custom_call.1} parent=5 // pred_check
        _
      $region10: #{tpu_custom_call.1} parent=5 // pred_check_branch
        %141 = sbr.rel (%p138) target = $region12
      $region11: #{tpu_custom_call.1} parent=5 // pred_region
        %s142 = ssub.s32 %s13, 1
        // Predicated region
        $region13: #{tpu_custom_call.1} parent=11 // pred_check
          %p143 = pneg %p60
        $region14: #{tpu_custom_call.1} parent=11 // pred_check_branch
          %145 = sbr.rel (%p143) target = $region16
        $region15: #{tpu_custom_call.1} parent=11 // pred_region
          _
        $region16: #{tpu_custom_call.1} parent=11 // pred_fallthru
          _
        // Predicated region
        $region17: #{tpu_custom_call.1} parent=11 // pred_check
          %p146 = pneg %p81
        $region18: #{tpu_custom_call.1} parent=11 // pred_check_branch
          %148 = sbr.rel (%p146) target = $region20
        $region19: #{tpu_custom_call.1} parent=11 // pred_region
          _
        $region20: #{tpu_custom_call.1} parent=11 // pred_fallthru
          _
        // Predicated region
        $region21: #{tpu_custom_call.1} parent=11 // pred_check
          %p149 = pneg %p102
        $region22: #{tpu_custom_call.1} parent=11 // pred_check_branch
          %151 = sbr.rel (%p149) target = $region24
        $region23: #{tpu_custom_call.1} parent=11 // pred_region
          _
        $region24: #{tpu_custom_call.1} parent=11 // pred_fallthru
          _
      $region12: #{tpu_custom_call.1} parent=5 // pred_fallthru
        _
      %p152 = scmp.lt.s32.totalorder %s13, 2
      // Predicated region
      $region25: #{tpu_custom_call.1} parent=5 // pred_check
        %p153 = pneg %p152
      $region26: #{tpu_custom_call.1} parent=5 // pred_check_branch
        %155 = sbr.rel (%p153) target = $region28
      $region27: #{tpu_custom_call.1} parent=5 // pred_region
        // Predicated region
        $region29: #{tpu_custom_call.1} parent=27 // pred_check
          %p156 = pneg %p33
        $region30: #{tpu_custom_call.1} parent=27 // pred_check_branch
          %158 = sbr.rel (%p156) target = $region32
        $region31: #{tpu_custom_call.1} parent=27 // pred_region
          %p159 = scmp.lt.s32.totalorder %s13, 1
          %s160 = scalar_select %p159, %s13, 1
          %s161 = smul.addr %s160, 8
          %s162 = scalar_lea.vmem %s0, %s161
        $region32: #{tpu_custom_call.1} parent=27 // pred_fallthru
          _
      $region28: #{tpu_custom_call.1} parent=5 // pred_fallthru
        _
      %p163 = scmp.le.s32.totalorder 1, %s13
      %p164 = scmp.lt.s32.totalorder %s13, 3
      %p165 = pnand %p163, %p164
      %p166 = pneg %p165
      // Predicated region
      $region33: #{tpu_custom_call.1} parent=5 // pred_check
        _
      $region34: #{tpu_custom_call.1} parent=5 // pred_check_branch
        %168 = sbr.rel (%p165) target = $region36
      $region35: #{tpu_custom_call.1} parent=5 // pred_region
        %s169 = ssub.s32 %s13, 1
        %p170 = scmp.lt.s32.totalorder %s18, 1
        %s171 = scalar_select %p170, %s18, 1
        %s172 = smul.addr %s171, 8
        %s173 = scalar_lea.vmem %s0, %s172
        %p174 = pneg %p39
        %p175 = pneg %p36
        %p176 = pneg %p60
        %p177 = pneg %p57
        %p178 = pneg %p81
        %p179 = pneg %p78
        %p180 = pneg %p102
        %p181 = pneg %p99
        %p182 = pneg %p128
        %p183 = pneg %p125
        %s184 = sand.u32 %s115, 1
        %s185 = scalar_lea.sflag [#allocation3], %s184
        %s186 = sand.u32 %s115, 1
        %s187 = smul.addr %s186, 8
        %s188 = scalar_lea.vmem [#allocation2], %s187
        %p189 = scmp.lt.s32.totalorder %s18, 1
        %s190 = scalar_select %p189, %s18, 1
        %s191 = smul.addr %s190, 8
        %s192 = scalar_lea.vmem %s0, %s191
        %v194 = vld [vmem:[%s192] sm:$0xff]
        %v195 = vpack.c.bf16 %v194, %v194
        %v196 = vld [vmem:[%s1] sm:$0xf]
        %v197 = vld [vmem:[%s1 + $0x4] sm:$0xf]
        %v198 = vld [vmem:[%s1 + $0x8] sm:$0xf]
        %v199 = vld [vmem:[%s1 + $0xc] sm:$0xf]
        %v200 = vld [vmem:[%s1 + $0x10] sm:$0xf]
        %v201 = vld [vmem:[%s1 + $0x14] sm:$0xf]
        %v202 = vld [vmem:[%s1 + $0x18] sm:$0xf]
        %v203 = vld [vmem:[%s1 + $0x1c] sm:$0xf]
        %v204 = vld [vmem:[%s1 + $0x20] sm:$0xf]
        %v205 = vld [vmem:[%s1 + $0x24] sm:$0xf]
        %v206 = vld [vmem:[%s1 + $0x28] sm:$0xf]
        %v207 = vld [vmem:[%s1 + $0x2c] sm:$0xf]
        %v220 = vunpack.c.l.b16 %v196
        %v221 = vunpack.c.l.b16 %v197
        %v222 = vunpack.c.l.b16 %v198
        %v223 = vunpack.c.l.b16 %v199
        %v224 = vunpack.c.l.b16 %v200
        %v225 = vunpack.c.l.b16 %v201
        %v226 = vunpack.c.l.b16 %v202
        %v227 = vunpack.c.l.b16 %v203
        %v228 = vunpack.c.l.b16 %v204
        %v229 = vunpack.c.l.b16 %v205
        %v230 = vunpack.c.l.b16 %v206
        %v231 = vunpack.c.l.b16 %v207
        %v232 = vpack.c.b16 %v221, %v220
        %v233 = vpack.c.b16 %v223, %v222
        %v234 = vpack.c.b16 %v225, %v224
        %v235 = vpack.c.b16 %v227, %v226
        %v236 = vpack.c.b16 %v229, %v228
        %v237 = vpack.c.b16 %v231, %v230
        %vm238 = vcmask 261120
        %v240 = vsel %vm238, %v232, 0
        %v243 = vsel %vm238, %v233, 0
        %v246 = vsel %vm238, %v234, 0
        %v249 = vsel %vm238, %v235, 0
        %v252 = vsel %vm238, %v236, 0
        %v255 = vsel %vm238, %v237, 0
        %v258 = vsel %vm238, %v195, 0
        %260 = vmatprep.subr.bf16.mxu0 0
        %261 = vmatpush1.bf16.xpose.msra.mxu0 %v258
        %262 = vmatprep.subr.bf16.mxu0 0
        %263 = vmatpush1.bf16.xpose.msra.mxu0 0
        %264 = vmatprep.subr.bf16.mxu0 0
        %265 = vmatpush1.bf16.xpose.msra.mxu0 0
        %266 = vmatprep.subr.bf16.mxu0 0
        %267 = vmatpush1.bf16.xpose.msra.mxu0 0
        %268 = vmatprep.subr.bf16.mxu0 0
        %269 = vmatpush1.bf16.xpose.msra.mxu0 0
        %270 = vmatprep.subr.bf16.mxu0 0
        %271 = vmatpush1.bf16.xpose.msra.mxu0 0
        %272 = vmatprep.subr.bf16.mxu0 0
        %273 = vmatpush1.bf16.xpose.msra.mxu0 0
        %274 = vmatprep.subr.bf16.mxu0 0
        %275 = vmatpush1.bf16.xpose.msra.mxu0 0
        %276 = vmatprep.subr.bf16.mxu0 0
        %277 = vmatpush1.bf16.xpose.msra.mxu0 0
        %278 = vmatprep.subr.bf16.mxu0 0
        %279 = vmatpush1.bf16.xpose.msra.mxu0 0
        %280 = vmatprep.subr.bf16.mxu0 0
        %281 = vmatpush1.bf16.xpose.msra.mxu0 0
        %282 = vmatprep.subr.bf16.mxu0 0
        %283 = vmatpush1.bf16.xpose.msra.mxu0 0
        %284 = vmatprep.subr.bf16.mxu0 0
        %285 = vmatpush1.bf16.xpose.msra.mxu0 0
        %286 = vmatprep.subr.bf16.mxu0 0
        %287 = vmatpush1.bf16.xpose.msra.mxu0 0
        %288 = vmatprep.subr.bf16.mxu0 0
        %289 = vmatpush1.bf16.xpose.msra.mxu0 0
        %290 = vmatprep.subr.bf16.mxu0 0
        %291 = vmatpush1.bf16.xpose.msra.mxu0 0
        %292 = vmatprep.mubr.bf16.mxu0 0
        %293 = vmatmul.mubr.bf16.gmra.mrb[0].mxu0 %v240
        %v294 = vpop.f32.mrb[0].mxu0
        %v295 = vadd.f32 0.0, %v294
        %v296 = vpop.f32.mrb[0].mxu0
        %v297 = vpop.f32.mrb[0].mxu0
        %v298 = vadd.f32 0.0, %v297
        %v299 = vpop.f32.mrb[0].mxu0
        %300 = vmatprep.mubr.bf16.mxu0 0
        %301 = vmatmul.mubr.bf16.gmra.mrb[0].mxu0 %v243
        %v302 = vpop.f32.mrb[0].mxu0
        %v303 = vadd.f32 0.0, %v302
        %v304 = vpop.f32.mrb[0].mxu0
        %v305 = vpop.f32.mrb[0].mxu0
        %v306 = vadd.f32 0.0, %v305
        %v307 = vpop.f32.mrb[0].mxu0
        %308 = vmatprep.mubr.bf16.mxu0 0
        %309 = vmatmul.mubr.bf16.gmra.mrb[0].mxu0 %v246
        %v310 = vpop.f32.mrb[0].mxu0
        %v311 = vadd.f32 0.0, %v310
        %v312 = vpop.f32.mrb[0].mxu0
        %v313 = vpop.f32.mrb[0].mxu0
        %v314 = vadd.f32 0.0, %v313
        %v315 = vpop.f32.mrb[0].mxu0
        %316 = vmatprep.mubr.bf16.mxu0 0
        %317 = vmatmul.mubr.bf16.gmra.mrb[0].mxu0 %v249
        %v318 = vpop.f32.mrb[0].mxu0
        %v319 = vadd.f32 0.0, %v318
        %v320 = vpop.f32.mrb[0].mxu0
        %v321 = vpop.f32.mrb[0].mxu0
        %v322 = vadd.f32 0.0, %v321
        %v323 = vpop.f32.mrb[0].mxu0
        %324 = vmatprep.mubr.bf16.mxu0 0
        %325 = vmatmul.mubr.bf16.gmra.mrb[0].mxu0 %v252
        %v326 = vpop.f32.mrb[0].mxu0
        %v327 = vadd.f32 0.0, %v326
        %v328 = vpop.f32.mrb[0].mxu0
        %v329 = vpop.f32.mrb[0].mxu0
        %v330 = vadd.f32 0.0, %v329
        %v331 = vpop.f32.mrb[0].mxu0
        %332 = vmatprep.mubr.bf16.mxu0 0
        %333 = vmatmul.mubr.bf16.gmra.mrb[0].mxu0 %v255
        %v334 = vpop.f32.mrb[0].mxu0
        %v335 = vadd.f32 0.0, %v334
        %v336 = vpop.f32.mrb[0].mxu0
        %v337 = vpop.f32.mrb[0].mxu0
        %v338 = vadd.f32 0.0, %v337
        %v339 = vpop.f32.mrb[0].mxu0
        %340 = vdwg.mxu0
        %v341 = vpack.c.bf16 %v295, %v295
        %v342 = vpack.c.bf16 %v298, %v298
        %v343 = vpack.c.bf16 %v303, %v303
        %v344 = vpack.c.bf16 %v306, %v306
        %v345 = vpack.c.bf16 %v311, %v311
        %v346 = vpack.c.bf16 %v314, %v314
        %v347 = vpack.c.bf16 %v319, %v319
        %v348 = vpack.c.bf16 %v322, %v322
        %v349 = vpack.c.bf16 %v327, %v327
        %v350 = vpack.c.bf16 %v330, %v330
        %v351 = vpack.c.bf16 %v335, %v335
        %v352 = vpack.c.bf16 %v338, %v338
        %v353 = vlaneseq
        %v354 = vshrl.u32 %v353, 7
        %v355 = vlaneseq
        %v356 = vand.u32 %v355, 127
        %vm357 = vcmp.le.s32.totalorder %v356, %v354
        %v358 = vsel %vm357, 0.0, -1e+30
        %359 = vxpose.xlu0.c.b16.start [1/8] %v341, 128
        %360 = vxpose.xlu0.c.b16.cont [2/8] 0, 128
        %361 = vxpose.xlu0.c.b16.cont [3/8] 0, 128
        %362 = vxpose.xlu0.c.b16.cont [4/8] 0, 128
        %363 = vxpose.xlu0.c.b16.cont [5/8] 0, 128
        %364 = vxpose.xlu0.c.b16.cont [6/8] 0, 128
        %365 = vxpose.xlu0.c.b16.cont [7/8] 0, 128
        %366 = vxpose.xlu0.c.b16.end [8/8] 0, 128
        %v367 = vpop.trf.xlu0
        %v368 = vpop.trf.xlu0
        %v369 = vpop.trf.xlu0
        %v370 = vpop.trf.xlu0
        %v371 = vpop.trf.xlu0
        %v372 = vpop.trf.xlu0
        %v373 = vpop.trf.xlu0
        %v374 = vpop.trf.xlu0
        %vm375 = vcmask 64512
        %v377 = vsel %vm375, %v367, 0
        %vm379 = vcmask 1043456
        %v381 = vsel %vm379, %v345, 0
        %383 = vmatprep.subr.bf16.mxu0 0
        %384 = vmatpush1.bf16.msra.mxu0 %v381
        %385 = vmatprep.subr.bf16.mxu0 0
        %386 = vmatpush1.bf16.msra.mxu0 0
        %387 = vmatprep.subr.bf16.mxu0 0
        %388 = vmatpush1.bf16.msra.mxu0 0
        %389 = vmatprep.subr.bf16.mxu0 0
        %390 = vmatpush1.bf16.msra.mxu0 0
        %391 = vmatprep.subr.bf16.mxu0 0
        %392 = vmatpush1.bf16.msra.mxu0 0
        %393 = vmatprep.subr.bf16.mxu0 0
        %394 = vmatpush1.bf16.msra.mxu0 0
        %395 = vmatprep.subr.bf16.mxu0 0
        %396 = vmatpush1.bf16.msra.mxu0 0
        %397 = vmatprep.subr.bf16.mxu0 0
        %398 = vmatpush1.bf16.msra.mxu0 0
        %399 = vmatprep.subr.bf16.mxu0 0
        %400 = vmatpush1.bf16.msra.mxu0 0
        %401 = vmatprep.subr.bf16.mxu0 0
        %402 = vmatpush1.bf16.msra.mxu0 0
        %403 = vmatprep.subr.bf16.mxu0 0
        %404 = vmatpush1.bf16.msra.mxu0 0
        %405 = vmatprep.subr.bf16.mxu0 0
        %406 = vmatpush1.bf16.msra.mxu0 0
        %407 = vmatprep.subr.bf16.mxu0 0
        %408 = vmatpush1.bf16.msra.mxu0 0
        %409 = vmatprep.subr.bf16.mxu0 0
        %410 = vmatpush1.bf16.msra.mxu0 0
        %411 = vmatprep.subr.bf16.mxu0 0
        %412 = vmatpush1.bf16.msra.mxu0 0
        %413 = vmatprep.subr.bf16.mxu0 0
        %414 = vmatpush1.bf16.msra.mxu0 0
        %415 = vmatprep.mubr.bf16.mxu0 0
        %416 = vmatmul.mubr.bf16.gmra.mrb[0].mxu0 %v377
        %v417 = vpop.f32.mrb[0].mxu0
        %v418 = vadd.f32 %v358, %v417
        %v419 = vpop.f32.mrb[0].mxu0
        %v420 = vpop.f32.mrb[0].mxu0
        %v421 = vpop.f32.mrb[0].mxu0
        %422 = vdwg.mxu0
        %423 = vxpose.xlu0.c.b16.start [1/8] %v342, 128
        %424 = vxpose.xlu0.c.b16.cont [2/8] 0, 128
        %425 = vxpose.xlu0.c.b16.cont [3/8] 0, 128
        %426 = vxpose.xlu0.c.b16.cont [4/8] 0, 128
        %427 = vxpose.xlu0.c.b16.cont [5/8] 0, 128
        %428 = vxpose.xlu0.c.b16.cont [6/8] 0, 128
        %429 = vxpose.xlu0.c.b16.cont [7/8] 0, 128
        %430 = vxpose.xlu0.c.b16.end [8/8] 0, 128
        %v431 = vpop.trf.xlu0
        %v432 = vpop.trf.xlu0
        %v433 = vpop.trf.xlu0
        %v434 = vpop.trf.xlu0
        %v435 = vpop.trf.xlu0
        %v436 = vpop.trf.xlu0
        %v437 = vpop.trf.xlu0
        %v438 = vpop.trf.xlu0
        %v440 = vsel %vm375, %v431, 0
        %v443 = vsel %vm379, %v346, 0
        %445 = vmatprep.subr.bf16.mxu0 0
        %446 = vmatpush1.bf16.msra.mxu0 %v443
        %447 = vmatprep.subr.bf16.mxu0 0
        %448 = vmatpush1.bf16.msra.mxu0 0
        %449 = vmatprep.subr.bf16.mxu0 0
        %450 = vmatpush1.bf16.msra.mxu0 0
        %451 = vmatprep.subr.bf16.mxu0 0
        %452 = vmatpush1.bf16.msra.mxu0 0
        %453 = vmatprep.subr.bf16.mxu0 0
        %454 = vmatpush1.bf16.msra.mxu0 0
        %455 = vmatprep.subr.bf16.mxu0 0
        %456 = vmatpush1.bf16.msra.mxu0 0
        %457 = vmatprep.subr.bf16.mxu0 0
        %458 = vmatpush1.bf16.msra.mxu0 0
        %459 = vmatprep.subr.bf16.mxu0 0
        %460 = vmatpush1.bf16.msra.mxu0 0
        %461 = vmatprep.subr.bf16.mxu0 0
        %462 = vmatpush1.bf16.msra.mxu0 0
        %463 = vmatprep.subr.bf16.mxu0 0
        %464 = vmatpush1.bf16.msra.mxu0 0
        %465 = vmatprep.subr.bf16.mxu0 0
        %466 = vmatpush1.bf16.msra.mxu0 0
        %467 = vmatprep.subr.bf16.mxu0 0
        %468 = vmatpush1.bf16.msra.mxu0 0
        %469 = vmatprep.subr.bf16.mxu0 0
        %470 = vmatpush1.bf16.msra.mxu0 0
        %471 = vmatprep.subr.bf16.mxu0 0
        %472 = vmatpush1.bf16.msra.mxu0 0
        %473 = vmatprep.subr.bf16.mxu0 0
        %474 = vmatpush1.bf16.msra.mxu0 0
        %475 = vmatprep.subr.bf16.mxu0 0
        %476 = vmatpush1.bf16.msra.mxu0 0
        %477 = vmatprep.mubr.bf16.mxu0 0
        %478 = vmatmul.mubr.bf16.gmra.mrb[0].mxu0 %v440
        %v479 = vpop.f32.mrb[0].mxu0
        %v480 = vadd.f32 %v358, %v479
        %v481 = vpop.f32.mrb[0].mxu0
        %v482 = vpop.f32.mrb[0].mxu0
        %v483 = vpop.f32.mrb[0].mxu0
        %484 = vdwg.mxu0
        %485 = vxpose.xlu0.c.b16.start [1/8] %v343, 128
        %486 = vxpose.xlu0.c.b16.cont [2/8] 0, 128
        %487 = vxpose.xlu0.c.b16.cont [3/8] 0, 128
        %488 = vxpose.xlu0.c.b16.cont [4/8] 0, 128
        %489 = vxpose.xlu0.c.b16.cont [5/8] 0, 128
        %490 = vxpose.xlu0.c.b16.cont [6/8] 0, 128
        %491 = vxpose.xlu0.c.b16.cont [7/8] 0, 128
        %492 = vxpose.xlu0.c.b16.end [8/8] 0, 128
        %v493 = vpop.trf.xlu0
        %v494 = vpop.trf.xlu0
        %v495 = vpop.trf.xlu0
        %v496 = vpop.trf.xlu0
        %v497 = vpop.trf.xlu0
        %v498 = vpop.trf.xlu0
        %v499 = vpop.trf.xlu0
        %v500 = vpop.trf.xlu0
        %v502 = vsel %vm375, %v493, 0
        %v505 = vsel %vm379, %v347, 0
        %507 = vmatprep.subr.bf16.mxu0 0
        %508 = vmatpush1.bf16.msra.mxu0 %v505
        %509 = vmatprep.subr.bf16.mxu0 0
        %510 = vmatpush1.bf16.msra.mxu0 0
        %511 = vmatprep.subr.bf16.mxu0 0
        %512 = vmatpush1.bf16.msra.mxu0 0
        %513 = vmatprep.subr.bf16.mxu0 0
        %514 = vmatpush1.bf16.msra.mxu0 0
        %515 = vmatprep.subr.bf16.mxu0 0
        %516 = vmatpush1.bf16.msra.mxu0 0
        %517 = vmatprep.subr.bf16.mxu0 0
        %518 = vmatpush1.bf16.msra.mxu0 0
        %519 = vmatprep.subr.bf16.mxu0 0
        %520 = vmatpush1.bf16.msra.mxu0 0
        %521 = vmatprep.subr.bf16.mxu0 0
        %522 = vmatpush1.bf16.msra.mxu0 0
        %523 = vmatprep.subr.bf16.mxu0 0
        %524 = vmatpush1.bf16.msra.mxu0 0
        %525 = vmatprep.subr.bf16.mxu0 0
        %526 = vmatpush1.bf16.msra.mxu0 0
        %527 = vmatprep.subr.bf16.mxu0 0
        %528 = vmatpush1.bf16.msra.mxu0 0
        %529 = vmatprep.subr.bf16.mxu0 0
        %530 = vmatpush1.bf16.msra.mxu0 0
        %531 = vmatprep.subr.bf16.mxu0 0
        %532 = vmatpush1.bf16.msra.mxu0 0
        %533 = vmatprep.subr.bf16.mxu0 0
        %534 = vmatpush1.bf16.msra.mxu0 0
        %535 = vmatprep.subr.bf16.mxu0 0
        %536 = vmatpush1.bf16.msra.mxu0 0
        %537 = vmatprep.subr.bf16.mxu0 0
        %538 = vmatpush1.bf16.msra.mxu0 0
        %539 = vmatprep.mubr.bf16.mxu0 0
        %540 = vmatmul.mubr.bf16.gmra.mrb[0].mxu0 %v502
        %v541 = vpop.f32.mrb[0].mxu0
        %v542 = vadd.f32 %v358, %v541
        %v543 = vpop.f32.mrb[0].mxu0
        %v544 = vpop.f32.mrb[0].mxu0
        %v545 = vpop.f32.mrb[0].mxu0
        %546 = vdwg.mxu0
        %547 = vxpose.xlu0.c.b16.start [1/8] %v344, 128
        %548 = vxpose.xlu0.c.b16.cont [2/8] 0, 128
        %549 = vxpose.xlu0.c.b16.cont [3/8] 0, 128
        %550 = vxpose.xlu0.c.b16.cont [4/8] 0, 128
        %551 = vxpose.xlu0.c.b16.cont [5/8] 0, 128
        %552 = vxpose.xlu0.c.b16.cont [6/8] 0, 128
        %553 = vxpose.xlu0.c.b16.cont [7/8] 0, 128
        %554 = vxpose.xlu0.c.b16.end [8/8] 0, 128
        %v555 = vpop.trf.xlu0
        %v556 = vpop.trf.xlu0
        %v557 = vpop.trf.xlu0
        %v558 = vpop.trf.xlu0
        %v559 = vpop.trf.xlu0
        %v560 = vpop.trf.xlu0
        %v561 = vpop.trf.xlu0
        %v562 = vpop.trf.xlu0
        %v564 = vsel %vm375, %v555, 0
        %v567 = vsel %vm379, %v348, 0
        %569 = vmatprep.subr.bf16.mxu0 0
        %570 = vmatpush1.bf16.msra.mxu0 %v567
        %571 = vmatprep.subr.bf16.mxu0 0
        %572 = vmatpush1.bf16.msra.mxu0 0
        %573 = vmatprep.subr.bf16.mxu0 0
        %574 = vmatpush1.bf16.msra.mxu0 0
        %575 = vmatprep.subr.bf16.mxu0 0
        %576 = vmatpush1.bf16.msra.mxu0 0
        %577 = vmatprep.subr.bf16.mxu0 0
        %578 = vmatpush1.bf16.msra.mxu0 0
        %579 = vmatprep.subr.bf16.mxu0 0
        %580 = vmatpush1.bf16.msra.mxu0 0
        %581 = vmatprep.subr.bf16.mxu0 0
        %582 = vmatpush1.bf16.msra.mxu0 0
        %583 = vmatprep.subr.bf16.mxu0 0
        %584 = vmatpush1.bf16.msra.mxu0 0
        %585 = vmatprep.subr.bf16.mxu0 0
        %586 = vmatpush1.bf16.msra.mxu0 0
        %587 = vmatprep.subr.bf16.mxu0 0
        %588 = vmatpush1.bf16.msra.mxu0 0
        %589 = vmatprep.subr.bf16.mxu0 0
        %590 = vmatpush1.bf16.msra.mxu0 0
        %591 = vmatprep.subr.bf16.mxu0 0
        %592 = vmatpush1.bf16.msra.mxu0 0
        %593 = vmatprep.subr.bf16.mxu0 0
        %594 = vmatpush1.bf16.msra.mxu0 0
        %595 = vmatprep.subr.bf16.mxu0 0
        %596 = vmatpush1.bf16.msra.mxu0 0
        %597 = vmatprep.subr.bf16.mxu0 0
        %598 = vmatpush1.bf16.msra.mxu0 0
        %599 = vmatprep.subr.bf16.mxu0 0
        %600 = vmatpush1.bf16.msra.mxu0 0
        %601 = vmatprep.mubr.bf16.mxu0 0
        %602 = vmatmul.mubr.bf16.gmra.mrb[0].mxu0 %v564
        %v603 = vpop.f32.mrb[0].mxu0
        %v604 = vadd.f32 %v358, %v603
        %v605 = vpop.f32.mrb[0].mxu0
        %v606 = vpop.f32.mrb[0].mxu0
        %v607 = vpop.f32.mrb[0].mxu0
        %608 = vdwg.mxu0
        %v609 = vsel %vm375, %v418, -inf
        %610 = vmax.xlane.f32.xlu0 %v609
        %v611 = vpop.xlane.xlu0 %610
        %v612 = vsel %vm375, %v480, -inf
        %613 = vmax.xlane.f32.xlu0 %v612
        %v614 = vpop.xlane.xlu0 %613
        %v615 = vsel %vm375, %v542, -inf
        %616 = vmax.xlane.f32.xlu0 %v615
        %v617 = vpop.xlane.xlu0 %616
        %v618 = vsel %vm375, %v604, -inf
        %619 = vmax.xlane.f32.xlu0 %v618
        %v620 = vpop.xlane.xlu0 %619
        %v621 = vsub.f32 %v418, %v611
        %v622 = vsub.f32 %v480, %v614
        %v623 = vsub.f32 %v542, %v617
        %v624 = vsub.f32 %v604, %v620
        %v625 = vmul.f32 %v621, 1.442695
        %v626 = vpow.pop %v625
        %v627 = vmul.f32 %v622, 1.442695
        %v628 = vpow.pop %v627
        %v629 = vmul.f32 %v623, 1.442695
        %v630 = vpow.pop %v629
        %v631 = vmul.f32 %v624, 1.442695
        %v632 = vpow.pop %v631
        %v633 = vsel %vm375, %v626, 0.0
        %634 = vadd.xlane.f32.xlu0 %v633
        %v635 = vpop.xlane.xlu0 %634
        %v636 = vsel %vm375, %v628, 0.0
        %637 = vadd.xlane.f32.xlu0 %v636
        %v638 = vpop.xlane.xlu0 %637
        %v639 = vsel %vm375, %v630, 0.0
        %640 = vadd.xlane.f32.xlu0 %v639
        %v641 = vpop.xlane.xlu0 %640
        %v642 = vsel %vm375, %v632, 0.0
        %643 = vadd.xlane.f32.xlu0 %v642
        %v644 = vpop.xlane.xlu0 %643
        %v645 = vrcp.pop %v635
        %v646 = vmul.f32 %v626, %v645
        %v647 = vrcp.pop %v638
        %v648 = vmul.f32 %v628, %v647
        %v649 = vrcp.pop %v641
        %v650 = vmul.f32 %v630, %v649
        %v651 = vrcp.pop %v644
        %v652 = vmul.f32 %v632, %v651
        %v653 = vpack.c.bf16 %v646, %v646
        %v654 = vpack.c.bf16 %v648, %v648
        %v655 = vpack.c.bf16 %v650, %v650
        %v656 = vpack.c.bf16 %v652, %v652
        %v658 = vsel %vm375, %v349, 0
        %v661 = vsel %vm375, %v653, 0
        %663 = vmatprep.subr.bf16.mxu0 0
        %664 = vmatpush1.bf16.xpose.msra.mxu0 %v661
        %665 = vmatprep.subr.bf16.mxu0 0
        %666 = vmatpush1.bf16.xpose.msra.mxu0 0
        %667 = vmatprep.subr.bf16.mxu0 0
        %668 = vmatpush1.bf16.xpose.msra.mxu0 0
        %669 = vmatprep.subr.bf16.mxu0 0
        %670 = vmatpush1.bf16.xpose.msra.mxu0 0
        %671 = vmatprep.subr.bf16.mxu0 0
        %672 = vmatpush1.bf16.xpose.msra.mxu0 0
        %673 = vmatprep.subr.bf16.mxu0 0
        %674 = vmatpush1.bf16.xpose.msra.mxu0 0
        %675 = vmatprep.subr.bf16.mxu0 0
        %676 = vmatpush1.bf16.xpose.msra.mxu0 0
        %677 = vmatprep.subr.bf16.mxu0 0
        %678 = vmatpush1.bf16.xpose.msra.mxu0 0
        %679 = vmatprep.subr.bf16.mxu0 0
        %680 = vmatpush1.bf16.xpose.msra.mxu0 0
        %681 = vmatprep.subr.bf16.mxu0 0
        %682 = vmatpush1.bf16.xpose.msra.mxu0 0
        %683 = vmatprep.subr.bf16.mxu0 0
        %684 = vmatpush1.bf16.xpose.msra.mxu0 0
        %685 = vmatprep.subr.bf16.mxu0 0
        %686 = vmatpush1.bf16.xpose.msra.mxu0 0
        %687 = vmatprep.subr.bf16.mxu0 0
        %688 = vmatpush1.bf16.xpose.msra.mxu0 0
        %689 = vmatprep.subr.bf16.mxu0 0
        %690 = vmatpush1.bf16.xpose.msra.mxu0 0
        %691 = vmatprep.subr.bf16.mxu0 0
        %692 = vmatpush1.bf16.xpose.msra.mxu0 0
        %693 = vmatprep.subr.bf16.mxu0 0
        %694 = vmatpush1.bf16.xpose.msra.mxu0 0
        %695 = vmatprep.mubr.bf16.mxu0 0
        %696 = vmatmul.mubr.bf16.gmra.mrb[0].mxu0 %v658
        %v697 = vpop.f32.mrb[0].mxu0
        %v698 = vadd.f32 0.0, %v697
        %v699 = vpop.f32.mrb[0].mxu0
        %v700 = vpop.f32.mrb[0].mxu0
        %v701 = vpop.f32.mrb[0].mxu0
        %702 = vdwg.mxu0
        %v704 = vsel %vm375, %v350, 0
        %v707 = vsel %vm375, %v654, 0
        %709 = vmatprep.subr.bf16.mxu0 0
        %710 = vmatpush1.bf16.xpose.msra.mxu0 %v707
        %711 = vmatprep.subr.bf16.mxu0 0
        %712 = vmatpush1.bf16.xpose.msra.mxu0 0
        %713 = vmatprep.subr.bf16.mxu0 0
        %714 = vmatpush1.bf16.xpose.msra.mxu0 0
        %715 = vmatprep.subr.bf16.mxu0 0
        %716 = vmatpush1.bf16.xpose.msra.mxu0 0
        %717 = vmatprep.subr.bf16.mxu0 0
        %718 = vmatpush1.bf16.xpose.msra.mxu0 0
        %719 = vmatprep.subr.bf16.mxu0 0
        %720 = vmatpush1.bf16.xpose.msra.mxu0 0
        %721 = vmatprep.subr.bf16.mxu0 0
        %722 = vmatpush1.bf16.xpose.msra.mxu0 0
        %723 = vmatprep.subr.bf16.mxu0 0
        %724 = vmatpush1.bf16.xpose.msra.mxu0 0
        %725 = vmatprep.subr.bf16.mxu0 0
        %726 = vmatpush1.bf16.xpose.msra.mxu0 0
        %727 = vmatprep.subr.bf16.mxu0 0
        %728 = vmatpush1.bf16.xpose.msra.mxu0 0
        %729 = vmatprep.subr.bf16.mxu0 0
        %730 = vmatpush1.bf16.xpose.msra.mxu0 0
        %731 = vmatprep.subr.bf16.mxu0 0
        %732 = vmatpush1.bf16.xpose.msra.mxu0 0
        %733 = vmatprep.subr.bf16.mxu0 0
        %734 = vmatpush1.bf16.xpose.msra.mxu0 0
        %735 = vmatprep.subr.bf16.mxu0 0
        %736 = vmatpush1.bf16.xpose.msra.mxu0 0
        %737 = vmatprep.subr.bf16.mxu0 0
        %738 = vmatpush1.bf16.xpose.msra.mxu0 0
        %739 = vmatprep.subr.bf16.mxu0 0
        %740 = vmatpush1.bf16.xpose.msra.mxu0 0
        %741 = vmatprep.mubr.bf16.mxu0 0
        %742 = vmatmul.mubr.bf16.gmra.mrb[0].mxu0 %v704
        %v743 = vpop.f32.mrb[0].mxu0
        %v744 = vadd.f32 0.0, %v743
        %v745 = vpop.f32.mrb[0].mxu0
        %v746 = vpop.f32.mrb[0].mxu0
        %v747 = vpop.f32.mrb[0].mxu0
        %748 = vdwg.mxu0
        %v750 = vsel %vm375, %v351, 0
        %v753 = vsel %vm375, %v655, 0
        %755 = vmatprep.subr.bf16.mxu0 0
        %756 = vmatpush1.bf16.xpose.msra.mxu0 %v753
        %757 = vmatprep.subr.bf16.mxu0 0
        %758 = vmatpush1.bf16.xpose.msra.mxu0 0
        %759 = vmatprep.subr.bf16.mxu0 0
        %760 = vmatpush1.bf16.xpose.msra.mxu0 0
        %761 = vmatprep.subr.bf16.mxu0 0
        %762 = vmatpush1.bf16.xpose.msra.mxu0 0
        %763 = vmatprep.subr.bf16.mxu0 0
        %764 = vmatpush1.bf16.xpose.msra.mxu0 0
        %765 = vmatprep.subr.bf16.mxu0 0
        %766 = vmatpush1.bf16.xpose.msra.mxu0 0
        %767 = vmatprep.subr.bf16.mxu0 0
        %768 = vmatpush1.bf16.xpose.msra.mxu0 0
        %769 = vmatprep.subr.bf16.mxu0 0
        %770 = vmatpush1.bf16.xpose.msra.mxu0 0
        %771 = vmatprep.subr.bf16.mxu0 0
        %772 = vmatpush1.bf16.xpose.msra.mxu0 0
        %773 = vmatprep.subr.bf16.mxu0 0
        %774 = vmatpush1.bf16.xpose.msra.mxu0 0
        %775 = vmatprep.subr.bf16.mxu0 0
        %776 = vmatpush1.bf16.xpose.msra.mxu0 0
        %777 = vmatprep.subr.bf16.mxu0 0
        %778 = vmatpush1.bf16.xpose.msra.mxu0 0
        %779 = vmatprep.subr.bf16.mxu0 0
        %780 = vmatpush1.bf16.xpose.msra.mxu0 0
        %781 = vmatprep.subr.bf16.mxu0 0
        %782 = vmatpush1.bf16.xpose.msra.mxu0 0
        %783 = vmatprep.subr.bf16.mxu0 0
        %784 = vmatpush1.bf16.xpose.msra.mxu0 0
        %785 = vmatprep.subr.bf16.mxu0 0
        %786 = vmatpush1.bf16.xpose.msra.mxu0 0
        %787 = vmatprep.mubr.bf16.mxu0 0
        %788 = vmatmul.mubr.bf16.gmra.mrb[0].mxu0 %v750
        %v789 = vpop.f32.mrb[0].mxu0
        %v790 = vadd.f32 0.0, %v789
        %v791 = vpop.f32.mrb[0].mxu0
        %v792 = vpop.f32.mrb[0].mxu0
        %v793 = vpop.f32.mrb[0].mxu0
        %794 = vdwg.mxu0
        %v796 = vsel %vm375, %v352, 0
        %v799 = vsel %vm375, %v656, 0
        %801 = vmatprep.subr.bf16.mxu0 0
        %802 = vmatpush1.bf16.xpose.msra.mxu0 %v799
        %803 = vmatprep.subr.bf16.mxu0 0
        %804 = vmatpush1.bf16.xpose.msra.mxu0 0
        %805 = vmatprep.subr.bf16.mxu0 0
        %806 = vmatpush1.bf16.xpose.msra.mxu0 0
        %807 = vmatprep.subr.bf16.mxu0 0
        %808 = vmatpush1.bf16.xpose.msra.mxu0 0
        %809 = vmatprep.subr.bf16.mxu0 0
        %810 = vmatpush1.bf16.xpose.msra.mxu0 0
        %811 = vmatprep.subr.bf16.mxu0 0
        %812 = vmatpush1.bf16.xpose.msra.mxu0 0
        %813 = vmatprep.subr.bf16.mxu0 0
        %814 = vmatpush1.bf16.xpose.msra.mxu0 0
        %815 = vmatprep.subr.bf16.mxu0 0
        %816 = vmatpush1.bf16.xpose.msra.mxu0 0
        %817 = vmatprep.subr.bf16.mxu0 0
        %818 = vmatpush1.bf16.xpose.msra.mxu0 0
        %819 = vmatprep.subr.bf16.mxu0 0
        %820 = vmatpush1.bf16.xpose.msra.mxu0 0
        %821 = vmatprep.subr.bf16.mxu0 0
        %822 = vmatpush1.bf16.xpose.msra.mxu0 0
        %823 = vmatprep.subr.bf16.mxu0 0
        %824 = vmatpush1.bf16.xpose.msra.mxu0 0
        %825 = vmatprep.subr.bf16.mxu0 0
        %826 = vmatpush1.bf16.xpose.msra.mxu0 0
        %827 = vmatprep.subr.bf16.mxu0 0
        %828 = vmatpush1.bf16.xpose.msra.mxu0 0
        %829 = vmatprep.subr.bf16.mxu0 0
        %830 = vmatpush1.bf16.xpose.msra.mxu0 0
        %831 = vmatprep.subr.bf16.mxu0 0
        %832 = vmatpush1.bf16.xpose.msra.mxu0 0
        %833 = vmatprep.mubr.bf16.mxu0 0
        %834 = vmatmul.mubr.bf16.gmra.mrb[0].mxu0 %v796
        %v835 = vpop.f32.mrb[0].mxu0
        %v836 = vadd.f32 0.0, %v835
        %v837 = vpop.f32.mrb[0].mxu0
        %v838 = vpop.f32.mrb[0].mxu0
        %v839 = vpop.f32.mrb[0].mxu0
        %840 = vdwg.mxu0
        %v841 = vpack.c.bf16 %v744, %v698
        %v842 = vpack.c.bf16 %v836, %v790
        %v843 = vld [vmem:[%s2] sm:$0xf]
        %v844 = vld [vmem:[%s2 + $0x4] sm:$0xf]
        %v845 = vld [vmem:[%s2 + $0x8] sm:$0xf]
        %v846 = vld [vmem:[%s2 + $0xc] sm:$0xf]
        %v847 = vld [vmem:[%s3] sm:$0x1]
        %v849 = vlaneseq
        %v850 = vshrl.u32 %v849, 7
        %v851 = vsub.s32 0, %v850
        %v852 = vrot.slane %v847, %v851
        %854 = vxpose.xlu0.c.b16.start [1/8] %v841, 128
        %855 = vxpose.xlu0.c.b16.cont [2/8] %v842, 128
        %856 = vxpose.xlu0.c.b16.cont [3/8] 0, 128
        %857 = vxpose.xlu0.c.b16.cont [4/8] 0, 128
        %858 = vxpose.xlu0.c.b16.cont [5/8] 0, 128
        %859 = vxpose.xlu0.c.b16.cont [6/8] 0, 128
        %860 = vxpose.xlu0.c.b16.cont [7/8] 0, 128
        %861 = vxpose.xlu0.c.b16.end [8/8] 0, 128
        %v862 = vpop.trf.xlu0
        %v863 = vpop.trf.xlu0
        %v864 = vpop.trf.xlu0
        %v865 = vpop.trf.xlu0
        %v866 = vpop.trf.xlu0
        %v867 = vpop.trf.xlu0
        %v868 = vpop.trf.xlu0
        %v869 = vpop.trf.xlu0
        %v874 = vunpack.c.l.b16 %v843
        %v875 = vunpack.c.l.b16 %v844
        %v876 = vunpack.c.l.b16 %v845
        %v877 = vunpack.c.l.b16 %v846
        %v878 = vpack.c.b16 %v875, %v874
        %v879 = vpack.c.b16 %v877, %v876
        %v883 = vsel %vm238, %v862, 0
        %885 = vmatprep.subr.bf16.mxu0 0
        %886 = vmatpush1.bf16.msra.mxu0 %v878
        %887 = vmatprep.subr.bf16.mxu0 0
        %888 = vmatpush1.bf16.msra.mxu0 %v879
        %889 = vmatprep.subr.bf16.mxu0 0
        %890 = vmatpush1.bf16.msra.mxu0 0
        %891 = vmatprep.subr.bf16.mxu0 0
        %892 = vmatpush1.bf16.msra.mxu0 0
        %893 = vmatprep.subr.bf16.mxu0 0
        %894 = vmatpush1.bf16.msra.mxu0 0
        %895 = vmatprep.subr.bf16.mxu0 0
        %896 = vmatpush1.bf16.msra.mxu0 0
        %897 = vmatprep.subr.bf16.mxu0 0
        %898 = vmatpush1.bf16.msra.mxu0 0
        %899 = vmatprep.subr.bf16.mxu0 0
        %900 = vmatpush1.bf16.msra.mxu0 0
        %901 = vmatprep.subr.bf16.mxu0 0
        %902 = vmatpush1.bf16.msra.mxu0 0
        %903 = vmatprep.subr.bf16.mxu0 0
        %904 = vmatpush1.bf16.msra.mxu0 0
        %905 = vmatprep.subr.bf16.mxu0 0
        %906 = vmatpush1.bf16.msra.mxu0 0
        %907 = vmatprep.subr.bf16.mxu0 0
        %908 = vmatpush1.bf16.msra.mxu0 0
        %909 = vmatprep.subr.bf16.mxu0 0
        %910 = vmatpush1.bf16.msra.mxu0 0
        %911 = vmatprep.subr.bf16.mxu0 0
        %912 = vmatpush1.bf16.msra.mxu0 0
        %913 = vmatprep.subr.bf16.mxu0 0
        %914 = vmatpush1.bf16.msra.mxu0 0
        %915 = vmatprep.subr.bf16.mxu0 0
        %916 = vmatpush1.bf16.msra.mxu0 0
        %917 = vmatprep.mubr.bf16.mxu0 0
        %918 = vmatmul.mubr.bf16.gmra.mrb[0].mxu0 %v883
        %v919 = vpop.f32.mrb[0].mxu0
        %v920 = vadd.f32 %v852, %v919
        %v921 = vpop.f32.mrb[0].mxu0
        %v922 = vpop.f32.mrb[0].mxu0
        %v923 = vpop.f32.mrb[0].mxu0
        %924 = vdwg.mxu0
        %925 = vst.msk [vmem:[%s188] sm:$0xff] %vm238, %v920
        %s926 = sand.u32 %s115, 1
        %s927 = scalar_lea.sflag [#allocation3], %s926
        %s928 = sand.u32 %s115, 1
        %s929 = smul.addr %s928, 8
        %s930 = scalar_lea.vmem [#allocation2], %s929
        // Predicated region
        $region37: #{tpu_custom_call.1} parent=35 // pred_check
          %p931 = pneg %p125
        $region38: #{tpu_custom_call.1} parent=35 // pred_check_branch
          %933 = sbr.rel (%p931) target = $region40
        $region39: #{tpu_custom_call.1} parent=35 // pred_region
          %s935 = ssub.s32 128, 128
          %936 = vsyncadd %s927, %s935
          %s937 = smul.addr %s18, 128
          %s938 = scalar_lea.hbm %s4, %s937
          %s940 = sshll.u32 %s930, 4
          %s941 = int_to_ptr.vmem [resolvable:$true] %s940
          %943 = dma.vmem_to_hbm [thread:$0]  %s941, 128, %s938, %s927
        $region40: #{tpu_custom_call.1} parent=35 // pred_fallthru
          _
      $region36: #{tpu_custom_call.1} parent=5 // pred_fallthru
        _
      %p944 = scmp.le.s32.totalorder 2, %s13
      // Predicated region
      $region41: #{tpu_custom_call.1} parent=5 // pred_check
        %p945 = pneg %p944
      $region42: #{tpu_custom_call.1} parent=5 // pred_check_branch
        %947 = sbr.rel (%p945) target = $region44
      $region43: #{tpu_custom_call.1} parent=5 // pred_region
        %s948 = ssub.s32 %s13, 2
        // Predicated region
        $region45: #{tpu_custom_call.1} parent=43 // pred_check
          %p949 = pneg %p131
        $region46: #{tpu_custom_call.1} parent=43 // pred_check_branch
          %951 = sbr.rel (%p949) target = $region48
        $region47: #{tpu_custom_call.1} parent=43 // pred_region
          %s952 = sand.u32 %s116, 1
          %s953 = scalar_lea.sflag [#allocation3], %s952
          %s954 = sand.u32 %s116, 1
          %s955 = smul.addr %s954, 8
          %s956 = scalar_lea.vmem [#allocation2], %s955
          %957 = dma.done %s953, 128
        $region48: #{tpu_custom_call.1} parent=43 // pred_fallthru
          _
      $region44: #{tpu_custom_call.1} parent=5 // pred_fallthru
        _
    $region6: #{tpu_custom_call.1} parent=1 // loop_footer
      %s17 = sadd.s32 1, %s13
    $region7: #{tpu_custom_call.1} parent=1 // loop_footer_branch
      %12 = sbr.rel target = $region3
    $region8: #{tpu_custom_call.1} parent=1 // loop_exit
      _
    %958 = vsyncpa [#allocation3], 1
    %s959 = scalar_lea.sflag [#allocation3], 1
    %960 = vsyncpa %s959, 1

</llo_original>
